<compile_context>
chip_gen: v7x
topology: tpu7x:2x2x1
jax: 0.10.0
libtpu: 0.0.40
codegen_flags: <defaults>
</compile_context>

<pallas_src>
from collections import OrderedDict, namedtuple

import jax
import jax.numpy as jnp
from jax.experimental import pallas as pl
from jax.experimental.pallas import tpu as pltpu


def _default_batch_block(B, HW, target_lanes=512):
    """Images per grid step: just enough that the matmul N reaches ~512 lanes
    (measured roofline knee); one image per step once HW itself is large, so
    the auto-pipeliner can overlap DMA with compute."""
    bb = min(B, max(1, -(-target_lanes // HW)))   # ceil(target/HW), capped at B
    while B % bb:
        bb -= 1
    return bb


def _make_engine_kernel(H, W, C_in, C_out, KH, KW, K_pad, batch_block):
    """Fused 3x3 conv (SAME pad) + folded bias + SiLU on flattened-NCHW slabs."""
    HW = H * W
    n_lanes = batch_block * HW
    n_taps = KH * KW
    ph, pw = KH // 2, KW // 2

    def kernel(x_ref, w_ref, m_ref, o_ref):
        # x_ref : (batch_block, C_in, H*W)    flattened NCHW input block
        # w_ref : (C_out, K_pad)              im2col weights; col n_taps*C_in is
        #                                     the bias, remaining cols are zero
        # m_ref : (KH*KW, H*W)                {0,1} halo masks per tap
        # o_ref : (batch_block, C_out, H*W)   NCHW output, spatial flattened
        x = x_ref[...]

        # Lane-pack the images of this step: image b occupies lane chunk
        # [b*HW, (b+1)*HW).  HW is a multiple of 128, so this is pure vreg
        # placement (no lane shuffles).
        if batch_block > 1:
            x2 = jnp.concatenate([x[b] for b in range(batch_block)], axis=1)
            masks = jnp.concatenate([m_ref[...]] * batch_block, axis=1)
        else:
            x2 = x[0]
            masks = m_ref[...]

        # im2col slab built entirely in registers (no scratch round-trip):
        # row (t*C_in + c) = tap-(kh,kw) shifted copy of channel c, with
        # out-of-image positions zeroed; roll wrap across image-chunk / array
        # boundaries lands only on masked halo positions.  Row 27 = ones (bias),
        # rows 28..31 = zero padding (sublane-aligned K).
        rows = []
        for kh in range(KH):
            for kw in range(KW):
                t = kh * KW + kw
                d = (kh - ph) * W + (kw - pw)          # flat spatial tap offset
                shift = (-d) % n_lanes                 # static lane roll
                tap = pltpu.roll(x2, shift, 1) if shift else x2
                rows.append(tap * masks[t:t + 1, :])
        rows.append(jnp.ones((1, n_lanes), x2.dtype))                  # bias row
        extra = K_pad - n_taps * C_in - 1
        if extra:
            rows.append(jnp.zeros((extra, n_lanes), x2.dtype))         # K padding
        col = jnp.concatenate(rows, axis=0)            # (K_pad, batch_block*HW)

        # Single MXU matmul per grid step: conv + bias in one contraction.
        acc = jnp.dot(w_ref[...], col, preferred_element_type=jnp.float32)

        # SiLU: exp and the approximate reciprocal both ride the EUP slot.
        y = acc * pl.reciprocal(1.0 + jnp.exp(-acc), approx=True)

        # Per-image stores: HW is a multiple of 128 -> lane-aligned unmasked vst,
        # already NCHW-ordered.
        for b in range(batch_block):
            o_ref[b] = y[:, b * HW:(b + 1) * HW].astype(o_ref.dtype)

    return kernel


def engine_forward_pallas(x_flat, w_mat, masks, *, H, W, KH=3, KW=3,
                          batch_block=None):
    """x_flat: (B, C_in, H*W) f32; w_mat: (C_out, K_pad) with bias folded in;
    masks: (KH*KW, H*W).  Returns (B, C_out, H*W)."""
    B, C_in, HW = x_flat.shape
    C_out, K_pad = w_mat.shape
    assert HW == H * W and K_pad >= KH * KW * C_in + 1

    if batch_block is None:
        batch_block = _default_batch_block(B, HW)
    if B % batch_block:
        batch_block = 1
    grid = (B // batch_block,)

    kernel = _make_engine_kernel(H, W, C_in, C_out, KH, KW, K_pad, batch_block)

    # TODO(synk): for real YOLO resolutions (e.g. 640x640) add an HW lane-tile
    # grid axis (with halo handling) so the slab fits v7x's 64 MiB VMEM and
    # both v7x TensorCores get work even when B == 1.
    return pl.pallas_call(
        kernel,
        out_shape=jax.ShapeDtypeStruct((B, C_out, HW), x_flat.dtype),
        grid_spec=pltpu.PrefetchScalarGridSpec(
            num_scalar_prefetch=0,
            grid=grid,
            in_specs=[
                pl.BlockSpec((batch_block, C_in, HW), lambda i: (i, 0, 0)),
                # Constant-index blocks stay resident across grid steps.
                pl.BlockSpec((C_out, K_pad), lambda i: (0, 0)),
                pl.BlockSpec((KH * KW, HW), lambda i: (0, 0)),
            ],
            out_specs=pl.BlockSpec((batch_block, C_out, HW),
                                   lambda i: (i, 0, 0)),
        ),
        compiler_params=pltpu.CompilerParams(
            dimension_semantics=("parallel",),
            vmem_limit_bytes=32 * 1024 * 1024),
    )(x_flat, w_mat, masks)


def check_class_names(names):
    if isinstance(names, list):
        names = dict(enumerate(names))
    if isinstance(names, dict):
        if not all(isinstance(k, int) for k in names.keys()):
            names = {int(k): v for k, v in names.items()}
    return names


Binding = namedtuple('Binding', ('name', 'dtype', 'shape', 'data', 'ptr'))


class AutoBackendPallas:
    """JAX/Pallas stand-in for ultralytics AutoBackend (TensorRT branch)."""

    def __init__(self, input_shape=(2, 3, 16, 16), c_out=16, fp16=False, seed=0):
        # Synthetic "engine": one fused Conv(3x3, pad 1) + bias + SiLU layer.
        # TODO(synk): a real TensorRT engine's graph is opaque; only this
        # representative conv block is implemented.
        self.fp16 = False            # forced False in the reference __init__
        self.dynamic = False
        B, C_in, H, W = input_shape
        KH = KW = 3
        K_TAPS = KH * KW * C_in                    # 27
        K_PAD = -(-(K_TAPS + 1) // 8) * 8          # 32: +bias row, sublane-aligned
        self.c_in, self.c_out, self.h, self.w = C_in, c_out, H, W
        self.kh, self.kw = KH, KW

        key = jax.random.PRNGKey(seed)
        kw_, kb_ = jax.random.split(key)
        # HWIO conv weight (kept for the lax.conv reference) ...
        self.weight = (jax.random.normal(kw_, (KH, KW, C_in, c_out), jnp.float32)
                       * (1.0 / K_TAPS ** 0.5))
        self.bias = jax.random.normal(kb_, (c_out,), jnp.float32) * 0.1
        # ... and its im2col form used by the kernel: (C_out, K_PAD), column
        # index = (kh*KW + kw)*C_in + c, column K_TAPS = folded bias, the rest
        # zero padding.
        w_im2col = jnp.transpose(self.weight.reshape(K_TAPS, c_out))   # (C_out, 27)
        self.w_mat = jnp.concatenate(
            [w_im2col, self.bias.reshape(c_out, 1),
             jnp.zeros((c_out, K_PAD - K_TAPS - 1), jnp.float32)], axis=1)
        # {0,1} halo masks, one row per tap: zero where (y+kh-1, x+kw-1) falls
        # outside the image (replaces wrapper-side jnp.pad and makes roll-wraps
        # harmless).
        yy, xx = jnp.meshgrid(jnp.arange(H), jnp.arange(W), indexing='ij')
        rows = []
        for kh in range(KH):
            for kwi in range(KW):
                dy, dx = kh - KH // 2, kwi - KW // 2
                valid = ((yy + dy >= 0) & (yy + dy < H) &
                         (xx + dx >= 0) & (xx + dx < W))
                rows.append(valid.reshape(-1))
        self.masks = jnp.stack(rows).astype(jnp.float32)   # (KH*KW, H*W)

        self.bindings = OrderedDict()
        self.bindings['images'] = Binding('images', jnp.float32,
                                          tuple(input_shape), None, 0)
        self.bindings['output0'] = Binding('output0', jnp.float32,
                                           (B, c_out, H, W), None, 0)
        self.output_names = ['output0']
        self.stride = 32
        self.names = check_class_names({i: f'class{i}' for i in range(999)})

    def forward(self, im, visualize=False):
        b, ch, h, w = im.shape                      # NCHW, as in PyTorch
        if self.fp16 and im.dtype != jnp.float16:
            im = im.astype(jnp.float16)  # TODO(synk): dead code, fp16 forced False (matches reference)
        s = self.bindings['images'].shape
        assert im.shape == s, (
            f"input size {im.shape} {'>' if self.dynamic else 'not equal to'} "
            f"max model size {s}")

        # Execute the "engine": a single fused pallas_call, NCHW in -> NCHW
        # out.  Both reshapes are contiguous (metadata-only), so no extra XLA
        # pad / transpose op surrounds the kernel.
        x_flat = im.astype(jnp.float32).reshape(b, ch, h * w)
        y_flat = engine_forward_pallas(x_flat, self.w_mat, self.masks,
                                       H=h, W=w, KH=self.kh, KW=self.kw)
        y_nchw = y_flat.reshape(b, self.c_out, h, w)

        y = [y_nchw for _ in sorted(self.output_names)]
        if isinstance(y, (list, tuple)):
            return y[0] if len(y) == 1 else list(y)
        return y

    def warmup(self, imgsz=(2, 3, 16, 16)):
        im = jnp.zeros(imgsz, dtype=jnp.float16 if self.fp16 else jnp.float32)
        for _ in range(1):
            self.forward(im)


def _reference_forward(model, im):
    """Pure-JAX reference for correctness checking."""
    x_nhwc = jnp.transpose(im.astype(jnp.float32), (0, 2, 3, 1))
    y = jax.lax.conv_general_dilated(
        x_nhwc, model.weight, window_strides=(1, 1), padding='SAME',
        dimension_numbers=('NHWC', 'HWIO', 'NHWC'),
        precision=jax.lax.Precision.HIGHEST)
    y = y + model.bias[None, None, None, :]
    y = y * jax.nn.sigmoid(y)
    return jnp.transpose(y, (0, 3, 1, 2))


if __name__ == "__main__":
    key = jax.random.PRNGKey(0)
    x = jax.random.normal(key, (2, 3, 16, 16), dtype=jnp.float32)  # NCHW

    model = AutoBackendPallas(input_shape=(2, 3, 16, 16), c_out=16)
    out = model.forward(x)
    out = jax.block_until_ready(out)

    ref = jax.block_until_ready(_reference_forward(model, x))
    assert out.shape == (2, 16, 16, 16)              # (B, C_out, H, W) NCHW
    # Tolerance covers the EUP approximate reciprocal used inside SiLU and the
    # f32 MXU accumulation path (both well inside 5e-3).
    assert jnp.allclose(out, ref, atol=5e-3, rtol=5e-3), "mismatch vs reference"

    print("KERNEL_OK")
</pallas_src>

<mosaic_0001>
module attributes {stable_mosaic.version = 11 : i64} {
  func.func @kernel(%arg0: i32, %arg1: memref<2x3x256xf32, #tpu.memory_space<vmem>>, %arg2: memref<16x32xf32, #tpu.memory_space<vmem>>, %arg3: memref<9x256xf32, #tpu.memory_space<vmem>>, %arg4: memref<2x16x256xf32, #tpu.memory_space<vmem>>) attributes {dimension_semantics = [#tpu.dimension_semantics<parallel>], iteration_bounds = array<i64: 1>, scalar_prefetch = 0 : i64, scratch_operands = 0 : i64, tpu.core_type = #tpu.core_type<tc>, window_params = [{transform_indices = @transform_0, window_bounds = array<i64: 2, 3, 256>}, {pipeline_mode = #tpu.pipeline_mode<synchronous>, transform_indices = @transform_1, window_bounds = array<i64: 16, 32>}, {pipeline_mode = #tpu.pipeline_mode<synchronous>, transform_indices = @transform_2, window_bounds = array<i64: 9, 256>}, {transform_indices = @transform_3, window_bounds = array<i64: 2, 16, 256>}]} {
    %c0 = arith.constant 0 : index
    %c0_0 = arith.constant 0 : index
    %c0_1 = arith.constant 0 : index
    %0 = vector.load %arg1[%c0, %c0_0, %c0_1] : memref<2x3x256xf32, #tpu.memory_space<vmem>>, vector<2x3x256xf32>
    %1 = vector.extract_strided_slice %0 {offsets = [0, 0, 0], sizes = [1, 3, 256], strides = [1, 1, 1]} : vector<2x3x256xf32> to vector<1x3x256xf32>
    %2 = vector.shape_cast %1 : vector<1x3x256xf32> to vector<3x256xf32>
    %3 = vector.extract_strided_slice %0 {offsets = [1, 0, 0], sizes = [1, 3, 256], strides = [1, 1, 1]} : vector<2x3x256xf32> to vector<1x3x256xf32>
    %4 = vector.shape_cast %3 : vector<1x3x256xf32> to vector<3x256xf32>
    %5 = tpu.concatenate %2, %4 in 1 : vector<3x256xf32>, vector<3x256xf32> -> vector<3x512xf32>
    %c0_2 = arith.constant 0 : index
    %c0_3 = arith.constant 0 : index
    %6 = vector.load %arg3[%c0_2, %c0_3] : memref<9x256xf32, #tpu.memory_space<vmem>>, vector<9x256xf32>
    %7 = tpu.concatenate %6, %6 in 1 : vector<9x256xf32>, vector<9x256xf32> -> vector<9x512xf32>
    %c17_i32 = arith.constant 17 : i32
    %8 = tpu.dynamic_rotate %5 by %c17_i32 dim 1 : vector<3x512xf32>, i32 -> vector<3x512xf32>
    %9 = vector.extract_strided_slice %7 {offsets = [0, 0], sizes = [1, 512], strides = [1, 1]} : vector<9x512xf32> to vector<1x512xf32>
    %10 = vector.broadcast %9 : vector<1x512xf32> to vector<3x512xf32>
    %11 = arith.mulf %8, %10 : vector<3x512xf32>
    %c16_i32 = arith.constant 16 : i32
    %12 = tpu.dynamic_rotate %5 by %c16_i32 dim 1 : vector<3x512xf32>, i32 -> vector<3x512xf32>
    %13 = vector.extract_strided_slice %7 {offsets = [1, 0], sizes = [1, 512], strides = [1, 1]} : vector<9x512xf32> to vector<1x512xf32>
    %14 = vector.broadcast %13 : vector<1x512xf32> to vector<3x512xf32>
    %15 = arith.mulf %12, %14 : vector<3x512xf32>
    %c15_i32 = arith.constant 15 : i32
    %16 = tpu.dynamic_rotate %5 by %c15_i32 dim 1 : vector<3x512xf32>, i32 -> vector<3x512xf32>
    %17 = vector.extract_strided_slice %7 {offsets = [2, 0], sizes = [1, 512], strides = [1, 1]} : vector<9x512xf32> to vector<1x512xf32>
    %18 = vector.broadcast %17 : vector<1x512xf32> to vector<3x512xf32>
    %19 = arith.mulf %16, %18 : vector<3x512xf32>
    %c1_i32 = arith.constant 1 : i32
    %20 = tpu.dynamic_rotate %5 by %c1_i32 dim 1 : vector<3x512xf32>, i32 -> vector<3x512xf32>
    %21 = vector.extract_strided_slice %7 {offsets = [3, 0], sizes = [1, 512], strides = [1, 1]} : vector<9x512xf32> to vector<1x512xf32>
    %22 = vector.broadcast %21 : vector<1x512xf32> to vector<3x512xf32>
    %23 = arith.mulf %20, %22 : vector<3x512xf32>
    %24 = vector.extract_strided_slice %7 {offsets = [4, 0], sizes = [1, 512], strides = [1, 1]} : vector<9x512xf32> to vector<1x512xf32>
    %25 = vector.broadcast %24 : vector<1x512xf32> to vector<3x512xf32>
    %26 = arith.mulf %5, %25 : vector<3x512xf32>
    %c511_i32 = arith.constant 511 : i32
    %27 = tpu.dynamic_rotate %5 by %c511_i32 dim 1 : vector<3x512xf32>, i32 -> vector<3x512xf32>
    %28 = vector.extract_strided_slice %7 {offsets = [5, 0], sizes = [1, 512], strides = [1, 1]} : vector<9x512xf32> to vector<1x512xf32>
    %29 = vector.broadcast %28 : vector<1x512xf32> to vector<3x512xf32>
    %30 = arith.mulf %27, %29 : vector<3x512xf32>
    %c497_i32 = arith.constant 497 : i32
    %31 = tpu.dynamic_rotate %5 by %c497_i32 dim 1 : vector<3x512xf32>, i32 -> vector<3x512xf32>
    %32 = vector.extract_strided_slice %7 {offsets = [6, 0], sizes = [1, 512], strides = [1, 1]} : vector<9x512xf32> to vector<1x512xf32>
    %33 = vector.broadcast %32 : vector<1x512xf32> to vector<3x512xf32>
    %34 = arith.mulf %31, %33 : vector<3x512xf32>
    %c496_i32 = arith.constant 496 : i32
    %35 = tpu.dynamic_rotate %5 by %c496_i32 dim 1 : vector<3x512xf32>, i32 -> vector<3x512xf32>
    %36 = vector.extract_strided_slice %7 {offsets = [7, 0], sizes = [1, 512], strides = [1, 1]} : vector<9x512xf32> to vector<1x512xf32>
    %37 = vector.broadcast %36 : vector<1x512xf32> to vector<3x512xf32>
    %38 = arith.mulf %35, %37 : vector<3x512xf32>
    %c495_i32 = arith.constant 495 : i32
    %39 = tpu.dynamic_rotate %5 by %c495_i32 dim 1 : vector<3x512xf32>, i32 -> vector<3x512xf32>
    %40 = vector.extract_strided_slice %7 {offsets = [8, 0], sizes = [1, 512], strides = [1, 1]} : vector<9x512xf32> to vector<1x512xf32>
    %41 = vector.broadcast %40 : vector<1x512xf32> to vector<3x512xf32>
    %42 = arith.mulf %39, %41 : vector<3x512xf32>
    %cst = arith.constant 1.000000e+00 : f32
    %43 = vector.broadcast %cst : f32 to vector<1x512xf32>
    %cst_4 = arith.constant 0.000000e+00 : f32
    %44 = vector.broadcast %cst_4 : f32 to vector<4x512xf32>
    %45 = tpu.concatenate %11, %15, %19, %23, %26, %30, %34, %38, %42, %43, %44 in 0 : vector<3x512xf32>, vector<3x512xf32>, vector<3x512xf32>, vector<3x512xf32>, vector<3x512xf32>, vector<3x512xf32>, vector<3x512xf32>, vector<3x512xf32>, vector<3x512xf32>, vector<1x512xf32>, vector<4x512xf32> -> vector<32x512xf32>
    %c0_5 = arith.constant 0 : index
    %c0_6 = arith.constant 0 : index
    %46 = vector.load %arg2[%c0_5, %c0_6] : memref<16x32xf32, #tpu.memory_space<vmem>>, vector<16x32xf32>
    %cst_7 = arith.constant dense<0.000000e+00> : vector<16x512xf32>
    %47 = tpu.matmul %46, %45, %cst_7 {dimension_numbers = #tpu.dot_dimension_numbers<[1], [0], [0], [1], [0, 0, 1, 1], [], []>} : vector<16x32xf32>, vector<32x512xf32>, vector<16x512xf32> -> vector<16x512xf32>
    %cst_8 = arith.constant 0.000000e+00 : f32
    %48 = vector.broadcast %cst_8 : f32 to vector<16x512xf32>
    %49 = arith.subf %48, %47 : vector<16x512xf32>
    %50 = math.exp %49 : vector<16x512xf32>
    %cst_9 = arith.constant 1.000000e+00 : f32
    %51 = vector.broadcast %cst_9 : f32 to vector<16x512xf32>
    %52 = arith.addf %51, %50 : vector<16x512xf32>
    %53 = tpu.reciprocal %52 {approx = true} : vector<16x512xf32> -> vector<16x512xf32>
    %54 = arith.mulf %47, %53 : vector<16x512xf32>
    %55 = vector.extract_strided_slice %54 {offsets = [0, 0], sizes = [16, 256], strides = [1, 1]} : vector<16x512xf32> to vector<16x256xf32>
    %c0_10 = arith.constant 0 : index
    %c0_11 = arith.constant 0 : index
    %c0_12 = arith.constant 0 : index
    %56 = vector.load %arg4[%c0_10, %c0_11, %c0_12] : memref<2x16x256xf32, #tpu.memory_space<vmem>>, vector<1x16x256xf32>
    %57 = vector.shape_cast %56 : vector<1x16x256xf32> to vector<16x256xf32>
    %58 = vector.shape_cast %55 : vector<16x256xf32> to vector<1x16x256xf32>
    tpu.vector_store %arg4[%c0_10, %c0_11, %c0_12], %58 {strides = array<i32>} : memref<2x16x256xf32, #tpu.memory_space<vmem>>, vector<1x16x256xf32>,
    %59 = vector.extract_strided_slice %54 {offsets = [0, 256], sizes = [16, 256], strides = [1, 1]} : vector<16x512xf32> to vector<16x256xf32>
    %c1 = arith.constant 1 : index
    %c0_13 = arith.constant 0 : index
    %c0_14 = arith.constant 0 : index
    %60 = vector.load %arg4[%c1, %c0_13, %c0_14] : memref<2x16x256xf32, #tpu.memory_space<vmem>>, vector<1x16x256xf32>
    %61 = vector.shape_cast %60 : vector<1x16x256xf32> to vector<16x256xf32>
    %62 = vector.shape_cast %59 : vector<16x256xf32> to vector<1x16x256xf32>
    tpu.vector_store %arg4[%c1, %c0_13, %c0_14], %62 {strides = array<i32>} : memref<2x16x256xf32, #tpu.memory_space<vmem>>, vector<1x16x256xf32>,
    return
  }
  func.func @transform_0(%arg0: i32) -> (i32, i32, i32) {
    %c0_i32 = arith.constant 0 : i32
    %c0_i32_0 = arith.constant 0 : i32
    %c0_i32_1 = arith.constant 0 : i32
    return %arg0, %c0_i32, %c0_i32_0 : i32, i32, i32
  }
  func.func @transform_1(%arg0: i32) -> (i32, i32) {
    %c0_i32 = arith.constant 0 : i32
    %c0_i32_0 = arith.constant 0 : i32
    %c0_i32_1 = arith.constant 0 : i32
    return %c0_i32, %c0_i32_0 : i32, i32
  }
  func.func @transform_2(%arg0: i32) -> (i32, i32) {
    %c0_i32 = arith.constant 0 : i32
    %c0_i32_0 = arith.constant 0 : i32
    %c0_i32_1 = arith.constant 0 : i32
    return %c0_i32, %c0_i32_0 : i32, i32
  }
  func.func @transform_3(%arg0: i32) -> (i32, i32, i32) {
    %c0_i32 = arith.constant 0 : i32
    %c0_i32_0 = arith.constant 0 : i32
    %c0_i32_1 = arith.constant 0 : i32
    return %arg0, %c0_i32, %c0_i32_0 : i32, i32, i32
  }
}

</mosaic_0001>

<llo_original>
// kernel: tpu_custom_call.1
$region0: #{tpu_custom_call.1}
  #allocation0 [shape = 'u32[]', space=smem, size = 0x4, offset = 0x4, fixed_abs, tag = 'smem constant byte address 0x4 - core index']
  #allocation1 [shape = 'u32[144,128]{1,0:T(1,128)}', space=vmem, size = 0x12000, scoped, tag = 'internal scratch']
  %s0 = inlined_call_operand.vmem [shape: f32[2,3,256], index: 0, kind: input, shape index: {}]
  %s1 = inlined_call_operand.hbm [shape: f32[16,32], index: 1, kind: input, shape index: {}]
  %s2 = inlined_call_operand.vmem [shape: f32[9,256], index: 2, kind: input, shape index: {}]
  %s3 = inlined_call_operand.hbm [shape: f32[2,16,256], index: 3, kind: output, shape index: {}]
  %s4 = sld [smem:[#allocation0]]
  $region26: #{tpu_custom_call.1} parent=0
    _
  %s6 = ssub.s32 1, %s4
  %s7 = scalar_select 0, %s6, %s4
  $region1: #{tpu_custom_call.1} parent=0
    #allocation2 [shape = 'u8[8192]{0}', space=vmem, size = 0x2000, scoped, tag = 'input window, operand 1, single buffered']
    #allocation3 [shape = 's32[1]{0}', space=sflag, size = 0x4, scoped, tag = 'scoped memory for tpu_custom_call.1']
    #allocation4 [shape = 's32[1]{0}', space=sflag, size = 0x4, scoped, tag = 'scoped memory for tpu_custom_call.1']
    #allocation5 [shape = 'u8[32768]{0}', space=vmem, size = 0x8000, scoped, tag = 'output window, operand 0, single buffered']
    %8 = vsyncpa [#allocation3], 0
    %9 = vsyncpa [#allocation4], 0
    // Predicated region
    $region2: #{tpu_custom_call.1} parent=1 // pred_check
      _
    $region3: #{tpu_custom_call.1} parent=1 // pred_check_branch
      %11 = sbr.rel (0) target = $region5
    $region4: #{tpu_custom_call.1} parent=1 // pred_region
      _
    $region5: #{tpu_custom_call.1} parent=1 // pred_fallthru
      _
    // Predicated region
    $region6: #{tpu_custom_call.1} parent=1 // pred_check
      _
    $region7: #{tpu_custom_call.1} parent=1 // pred_check_branch
      %13 = sbr.rel (0) target = $region9
    $region8: #{tpu_custom_call.1} parent=1 // pred_region
      %s15 = ssub.s32 256, 256
      %16 = vsyncadd [#allocation3], %s15
      %s17 = sshll.u32 [#allocation2], 4
      %s18 = int_to_ptr.vmem [resolvable:$true] %s17
      %23 = dma.hbm_to_vmem [thread:$0]  %s1, 256, %s18, [#allocation3], 128, 128, 8
    $region9: #{tpu_custom_call.1} parent=1 // pred_fallthru
      _
    // Predicated region
    $region10: #{tpu_custom_call.1} parent=1 // pred_check
      _
    $region11: #{tpu_custom_call.1} parent=1 // pred_check_branch
      %25 = sbr.rel (0) target = $region13
    $region12: #{tpu_custom_call.1} parent=1 // pred_region
      _
    $region13: #{tpu_custom_call.1} parent=1 // pred_fallthru
      _
    // Predicated region
    $region14: #{tpu_custom_call.1} parent=1 // pred_check
      _
    $region15: #{tpu_custom_call.1} parent=1 // pred_check_branch
      %27 = sbr.rel (0) target = $region17
    $region16: #{tpu_custom_call.1} parent=1 // pred_region
      %28 = dma.done [#allocation3], 256
    $region17: #{tpu_custom_call.1} parent=1 // pred_fallthru
      _
    %v29 = vld [vmem:[%s0] sm:$0x77]
    %v30 = vld [vmem:[%s0 + $0x8] sm:$0x77]
    %v32 = vcombine.high %v29, %v29
    %v35 = vcombine.high %v30, %v30
    %v37 = vld [vmem:[%s2] sm:$0xff]
    %v38 = vld [vmem:[%s2 + $0x8] sm:$0xff]
    %v39 = vld [vmem:[%s2 + $0x10] sm:$0x1]
    %v40 = vld [vmem:[%s2 + $0x18] sm:$0x1]
    %41 = vrot.lane.b32.xlu0 %v29, 17
    %v42 = vpop.permute.xlu0 %41
    %43 = vrot.lane.b32.xlu0 %v32, 17
    %v44 = vpop.permute.xlu0 %43
    %45 = vrot.lane.b32.xlu0 %v30, 17
    %v46 = vpop.permute.xlu0 %45
    %47 = vrot.lane.b32.xlu0 %v35, 17
    %v48 = vpop.permute.xlu0 %47
    %v49 = vlaneseq
    %v50 = vand.u32 %v49, 127
    %vm51 = vcmp.lt.s32.totalorder %v50, 17
    %v52 = vsel %vm51, %v46, %v48
    %v53 = vsel %vm51, %v44, %v46
    %v54 = vsel %vm51, %v42, %v44
    %v55 = vsel %vm51, %v48, %v42
    %v56 = vlaneseq
    %v57 = vshrl.u32 %v56, 7
    %v58 = vsub.s32 0, %v57
    %v59 = vrot.slane %v37, %v58
    %v60 = vlaneseq
    %v61 = vshrl.u32 %v60, 7
    %v62 = vsub.s32 0, %v61
    %v63 = vrot.slane %v38, %v62
    %v64 = vmul.f32 %v55, %v59
    %v65 = vmul.f32 %v54, %v63
    %v66 = vmul.f32 %v53, %v59
    %v67 = vmul.f32 %v52, %v63
    %68 = vrot.lane.b32.xlu0 %v29, 16
    %v69 = vpop.permute.xlu0 %68
    %70 = vrot.lane.b32.xlu0 %v32, 16
    %v71 = vpop.permute.xlu0 %70
    %72 = vrot.lane.b32.xlu0 %v30, 16
    %v73 = vpop.permute.xlu0 %72
    %74 = vrot.lane.b32.xlu0 %v35, 16
    %v75 = vpop.permute.xlu0 %74
    %vm76 = vcmp.lt.s32.totalorder %v50, 16
    %v77 = vsel %vm76, %v73, %v75
    %v78 = vsel %vm76, %v71, %v73
    %v79 = vsel %vm76, %v69, %v71
    %v80 = vsel %vm76, %v75, %v69
    %v81 = vlaneseq
    %v82 = vshrl.u32 %v81, 7
    %v83 = vsub.s32 1, %v82
    %v84 = vrot.slane %v37, %v83
    %v85 = vlaneseq
    %v86 = vshrl.u32 %v85, 7
    %v87 = vsub.s32 1, %v86
    %v88 = vrot.slane %v38, %v87
    %v89 = vmul.f32 %v80, %v84
    %v90 = vmul.f32 %v79, %v88
    %v91 = vmul.f32 %v78, %v84
    %v92 = vmul.f32 %v77, %v88
    %93 = vrot.lane.b32.xlu0 %v29, 15
    %v94 = vpop.permute.xlu0 %93
    %95 = vrot.lane.b32.xlu0 %v32, 15
    %v96 = vpop.permute.xlu0 %95
    %97 = vrot.lane.b32.xlu0 %v30, 15
    %v98 = vpop.permute.xlu0 %97
    %99 = vrot.lane.b32.xlu0 %v35, 15
    %v100 = vpop.permute.xlu0 %99
    %vm101 = vcmp.lt.s32.totalorder %v50, 15
    %v102 = vsel %vm101, %v98, %v100
    %v103 = vsel %vm101, %v96, %v98
    %v104 = vsel %vm101, %v94, %v96
    %v105 = vsel %vm101, %v100, %v94
    %v106 = vlaneseq
    %v107 = vshrl.u32 %v106, 7
    %v108 = vsub.s32 2, %v107
    %v109 = vrot.slane %v37, %v108
    %v110 = vlaneseq
    %v111 = vshrl.u32 %v110, 7
    %v112 = vsub.s32 2, %v111
    %v113 = vrot.slane %v38, %v112
    %v114 = vmul.f32 %v105, %v109
    %v115 = vmul.f32 %v104, %v113
    %v116 = vmul.f32 %v103, %v109
    %v117 = vmul.f32 %v102, %v113
    %118 = vrot.lane.b32.xlu0 %v29, 1
    %v119 = vpop.permute.xlu0 %118
    %120 = vrot.lane.b32.xlu0 %v32, 1
    %v121 = vpop.permute.xlu0 %120
    %122 = vrot.lane.b32.xlu0 %v30, 1
    %v123 = vpop.permute.xlu0 %122
    %124 = vrot.lane.b32.xlu0 %v35, 1
    %v125 = vpop.permute.xlu0 %124
    %vm126 = vcmp.lt.s32.totalorder %v50, 1
    %v127 = vsel %vm126, %v123, %v125
    %v128 = vsel %vm126, %v121, %v123
    %v129 = vsel %vm126, %v119, %v121
    %v130 = vsel %vm126, %v125, %v119
    %v131 = vlaneseq
    %v132 = vshrl.u32 %v131, 7
    %v133 = vsub.s32 3, %v132
    %v134 = vrot.slane %v37, %v133
    %v135 = vlaneseq
    %v136 = vshrl.u32 %v135, 7
    %v137 = vsub.s32 3, %v136
    %v138 = vrot.slane %v38, %v137
    %v139 = vmul.f32 %v130, %v134
    %v140 = vmul.f32 %v129, %v138
    %v141 = vmul.f32 %v128, %v134
    %v142 = vmul.f32 %v127, %v138
    %v143 = vlaneseq
    %v144 = vshrl.u32 %v143, 7
    %v145 = vsub.s32 4, %v144
    %v146 = vrot.slane %v37, %v145
    %v147 = vlaneseq
    %v148 = vshrl.u32 %v147, 7
    %v149 = vsub.s32 4, %v148
    %v150 = vrot.slane %v38, %v149
    %v151 = vmul.f32 %v29, %v146
    %v152 = vmul.f32 %v32, %v150
    %v153 = vmul.f32 %v30, %v146
    %v154 = vmul.f32 %v35, %v150
    %155 = vrot.lane.b32.xlu0 %v29, 127
    %v156 = vpop.permute.xlu0 %155
    %157 = vrot.lane.b32.xlu0 %v32, 127
    %v158 = vpop.permute.xlu0 %157
    %159 = vrot.lane.b32.xlu0 %v30, 127
    %v160 = vpop.permute.xlu0 %159
    %161 = vrot.lane.b32.xlu0 %v35, 127
    %v162 = vpop.permute.xlu0 %161
    %vm163 = vcmp.lt.s32.totalorder %v50, 127
    %v164 = vsel %vm163, %v160, %v162
    %v165 = vsel %vm163, %v158, %v160
    %v166 = vsel %vm163, %v156, %v158
    %v167 = vsel %vm163, %v162, %v156
    %v168 = vlaneseq
    %v169 = vshrl.u32 %v168, 7
    %v170 = vsub.s32 5, %v169
    %v171 = vrot.slane %v37, %v170
    %v172 = vlaneseq
    %v173 = vshrl.u32 %v172, 7
    %v174 = vsub.s32 5, %v173
    %v175 = vrot.slane %v38, %v174
    %v176 = vmul.f32 %v166, %v171
    %v177 = vmul.f32 %v165, %v175
    %v178 = vmul.f32 %v164, %v171
    %v179 = vmul.f32 %v167, %v175
    %180 = vrot.lane.b32.xlu0 %v29, 113
    %v181 = vpop.permute.xlu0 %180
    %182 = vrot.lane.b32.xlu0 %v32, 113
    %v183 = vpop.permute.xlu0 %182
    %184 = vrot.lane.b32.xlu0 %v30, 113
    %v185 = vpop.permute.xlu0 %184
    %186 = vrot.lane.b32.xlu0 %v35, 113
    %v187 = vpop.permute.xlu0 %186
    %vm188 = vcmp.lt.s32.totalorder %v50, 113
    %v189 = vsel %vm188, %v185, %v187
    %v190 = vsel %vm188, %v183, %v185
    %v191 = vsel %vm188, %v181, %v183
    %v192 = vsel %vm188, %v187, %v181
    %v193 = vlaneseq
    %v194 = vshrl.u32 %v193, 7
    %v195 = vsub.s32 6, %v194
    %v196 = vrot.slane %v37, %v195
    %v197 = vlaneseq
    %v198 = vshrl.u32 %v197, 7
    %v199 = vsub.s32 6, %v198
    %v200 = vrot.slane %v38, %v199
    %v201 = vmul.f32 %v191, %v196
    %v202 = vmul.f32 %v190, %v200
    %v203 = vmul.f32 %v189, %v196
    %v204 = vmul.f32 %v192, %v200
    %205 = vrot.lane.b32.xlu0 %v29, 112
    %v206 = vpop.permute.xlu0 %205
    %207 = vrot.lane.b32.xlu0 %v32, 112
    %v208 = vpop.permute.xlu0 %207
    %209 = vrot.lane.b32.xlu0 %v30, 112
    %v210 = vpop.permute.xlu0 %209
    %211 = vrot.lane.b32.xlu0 %v35, 112
    %v212 = vpop.permute.xlu0 %211
    %vm213 = vcmp.lt.s32.totalorder %v50, 112
    %v214 = vsel %vm213, %v210, %v212
    %v215 = vsel %vm213, %v208, %v210
    %v216 = vsel %vm213, %v206, %v208
    %v217 = vsel %vm213, %v212, %v206
    %v218 = vlaneseq
    %v219 = vshrl.u32 %v218, 7
    %v220 = vsub.s32 7, %v219
    %v221 = vrot.slane %v37, %v220
    %v222 = vlaneseq
    %v223 = vshrl.u32 %v222, 7
    %v224 = vsub.s32 7, %v223
    %v225 = vrot.slane %v38, %v224
    %v226 = vmul.f32 %v216, %v221
    %v227 = vmul.f32 %v215, %v225
    %v228 = vmul.f32 %v214, %v221
    %v229 = vmul.f32 %v217, %v225
    %230 = vrot.lane.b32.xlu0 %v29, 111
    %v231 = vpop.permute.xlu0 %230
    %232 = vrot.lane.b32.xlu0 %v32, 111
    %v233 = vpop.permute.xlu0 %232
    %234 = vrot.lane.b32.xlu0 %v30, 111
    %v235 = vpop.permute.xlu0 %234
    %236 = vrot.lane.b32.xlu0 %v35, 111
    %v237 = vpop.permute.xlu0 %236
    %vm238 = vcmp.lt.s32.totalorder %v50, 111
    %v239 = vsel %vm238, %v235, %v237
    %v240 = vsel %vm238, %v233, %v235
    %v241 = vsel %vm238, %v231, %v233
    %v242 = vsel %vm238, %v237, %v231
    %v243 = vlaneseq
    %v244 = vshrl.u32 %v243, 7
    %v245 = vsub.s32 0, %v244
    %v246 = vrot.slane %v39, %v245
    %v247 = vlaneseq
    %v248 = vshrl.u32 %v247, 7
    %v249 = vsub.s32 0, %v248
    %v250 = vrot.slane %v40, %v249
    %v251 = vmul.f32 %v241, %v246
    %v252 = vmul.f32 %v240, %v250
    %v253 = vmul.f32 %v239, %v246
    %v254 = vmul.f32 %v242, %v250
    %v259 = vrot.slane %v89, 5
    %v260 = vrot.slane %v90, 5
    %v261 = vrot.slane %v91, 5
    %v262 = vrot.slane %v92, 5
    %v271 = vrot.slane %v114, 2
    %v272 = vrot.slane %v115, 2
    %v273 = vrot.slane %v116, 2
    %v274 = vrot.slane %v117, 2
    %v283 = vrot.slane %v139, 7
    %v284 = vrot.slane %v140, 7
    %v285 = vrot.slane %v141, 7
    %v286 = vrot.slane %v142, 7
    %v295 = vrot.slane %v151, 4
    %v296 = vrot.slane %v152, 4
    %v297 = vrot.slane %v153, 4
    %v298 = vrot.slane %v154, 4
    %v307 = vrot.slane %v176, 1
    %v308 = vrot.slane %v177, 1
    %v309 = vrot.slane %v178, 1
    %v310 = vrot.slane %v179, 1
    %v319 = vrot.slane %v201, 6
    %v320 = vrot.slane %v202, 6
    %v321 = vrot.slane %v203, 6
    %v322 = vrot.slane %v204, 6
    %v331 = vrot.slane %v226, 3
    %v332 = vrot.slane %v227, 3
    %v333 = vrot.slane %v228, 3
    %v334 = vrot.slane %v229, 3
    %vm339 = vcmask 1042432
    %v340 = vsel %vm339, %v64, %v259
    %v341 = vsel %vm339, %v65, %v260
    %v342 = vsel %vm339, %v66, %v261
    %v343 = vsel %vm339, %v67, %v262
    %vm344 = vcmask 1045504
    %v345 = vsel %vm344, %v340, %v271
    %v346 = vsel %vm344, %v341, %v272
    %v347 = vsel %vm344, %v342, %v273
    %v348 = vsel %vm344, %v343, %v274
    %vm349 = vcmask 1040384
    %v350 = vsel %vm349, %v271, %v283
    %v351 = vsel %vm349, %v272, %v284
    %v352 = vsel %vm349, %v273, %v285
    %v353 = vsel %vm349, %v274, %v286
    %vm354 = vcmask 1043456
    %v355 = vsel %vm354, %v350, %v295
    %v356 = vsel %vm354, %v351, %v296
    %v357 = vsel %vm354, %v352, %v297
    %v358 = vsel %vm354, %v353, %v298
    %vm359 = vcmask 1046528
    %v360 = vsel %vm359, %v355, %v307
    %v361 = vsel %vm359, %v356, %v308
    %v362 = vsel %vm359, %v357, %v309
    %v363 = vsel %vm359, %v358, %v310
    %vm364 = vcmask 1041408
    %v365 = vsel %vm364, %v307, %v319
    %v366 = vsel %vm364, %v308, %v320
    %v367 = vsel %vm364, %v309, %v321
    %v368 = vsel %vm364, %v310, %v322
    %vm369 = vcmask 1044480
    %v370 = vsel %vm369, %v365, %v331
    %v371 = vsel %vm369, %v366, %v332
    %v372 = vsel %vm369, %v367, %v333
    %v373 = vsel %vm369, %v368, %v334
    %v374 = vsel %vm339, %v251, 1.0
    %v375 = vsel %vm339, %v252, 1.0
    %v376 = vsel %vm339, %v253, 1.0
    %v377 = vsel %vm339, %v254, 1.0
    %v378 = vsel %vm354, %v374, 0.0
    %v379 = vsel %vm354, %v375, 0.0
    %v380 = vsel %vm354, %v376, 0.0
    %v381 = vsel %vm354, %v377, 0.0
    %v382 = vld [vmem:[#allocation2] sm:$0xff]
    %v383 = vld [vmem:[#allocation2 + $0x8] sm:$0xff]
    %vm384 = vcmask 261120
    %v386 = vsel %vm384, %v382, 0
    %v389 = vsel %vm384, %v383, 0
    %391 = vmatprep.subr.mxu0 %v346
    %392 = vmatpush1.msra.mxu0 %v345
    %393 = vmatprep.subr.mxu0 %v361
    %394 = vmatpush1.msra.mxu0 %v360
    %395 = vmatprep.subr.mxu0 %v371
    %396 = vmatpush1.msra.mxu0 %v370
    %397 = vmatprep.subr.mxu0 %v379
    %398 = vmatpush1.msra.mxu0 %v378
    %399 = vmatprep.subr.mxu0 0.0
    %400 = vmatpush1.msra.mxu0 0.0
    %401 = vmatprep.subr.mxu0 0.0
    %402 = vmatpush1.msra.mxu0 0.0
    %403 = vmatprep.subr.mxu0 0.0
    %404 = vmatpush1.msra.mxu0 0.0
    %405 = vmatprep.subr.mxu0 0.0
    %406 = vmatpush1.msra.mxu0 0.0
    %407 = vmatprep.subr.mxu0 0.0
    %408 = vmatpush1.msra.mxu0 0.0
    %409 = vmatprep.subr.mxu0 0.0
    %410 = vmatpush1.msra.mxu0 0.0
    %411 = vmatprep.subr.mxu0 0.0
    %412 = vmatpush1.msra.mxu0 0.0
    %413 = vmatprep.subr.mxu0 0.0
    %414 = vmatpush1.msra.mxu0 0.0
    %415 = vmatprep.subr.mxu0 0.0
    %416 = vmatpush1.msra.mxu0 0.0
    %417 = vmatprep.subr.mxu0 0.0
    %418 = vmatpush1.msra.mxu0 0.0
    %419 = vmatprep.subr.mxu0 0.0
    %420 = vmatpush1.msra.mxu0 0.0
    %421 = vmatprep.subr.mxu0 0.0
    %422 = vmatpush1.msra.mxu0 0.0
    %423 = vmatprep.subr.mxu0 0.0
    %424 = vmatpush1.msra.mxu0 0.0
    %425 = vmatprep.subr.mxu0 0.0
    %426 = vmatpush1.msra.mxu0 0.0
    %427 = vmatprep.subr.mxu0 0.0
    %428 = vmatpush1.msra.mxu0 0.0
    %429 = vmatprep.subr.mxu0 0.0
    %430 = vmatpush1.msra.mxu0 0.0
    %431 = vmatprep.subr.mxu0 0.0
    %432 = vmatpush1.msra.mxu0 0.0
    %433 = vmatprep.subr.mxu0 0.0
    %434 = vmatpush1.msra.mxu0 0.0
    %435 = vmatprep.subr.mxu0 0.0
    %436 = vmatpush1.msra.mxu0 0.0
    %437 = vmatprep.subr.mxu0 0.0
    %438 = vmatpush1.msra.mxu0 0.0
    %439 = vmatprep.subr.mxu0 0.0
    %440 = vmatpush1.msra.mxu0 0.0
    %441 = vmatprep.subr.mxu0 0.0
    %442 = vmatpush1.msra.mxu0 0.0
    %443 = vmatprep.subr.mxu0 0.0
    %444 = vmatpush1.msra.mxu0 0.0
    %445 = vmatprep.subr.mxu0 0.0
    %446 = vmatpush1.msra.mxu0 0.0
    %447 = vmatprep.subr.mxu0 0.0
    %448 = vmatpush1.msra.mxu0 0.0
    %449 = vmatprep.subr.mxu0 0.0
    %450 = vmatpush1.msra.mxu0 0.0
    %451 = vmatprep.subr.mxu0 0.0
    %452 = vmatpush1.msra.mxu0 0.0
    %453 = vmatprep.subr.mxu0 0.0
    %454 = vmatpush1.msra.mxu0 0.0
    %455 = vmatprep.mubr.f32.mxu0 0.0
    %456 = vmatmul.mubr.f32.gmra.mrb[0].mxu0 %v386
    %v457 = vpop.f32.mrb[0].mxu0
    %v458 = vadd.f32 0.0, %v457
    %v459 = vpop.f32.mrb[0].mxu0
    %v460 = vadd.f32 0.0, %v459
    %461 = vmatprep.mubr.f32.mxu0 0.0
    %462 = vmatmul.mubr.f32.gmra.mrb[0].mxu0 %v389
    %v463 = vpop.f32.mrb[0].mxu0
    %v464 = vadd.f32 0.0, %v463
    %v465 = vpop.f32.mrb[0].mxu0
    %v466 = vadd.f32 0.0, %v465
    %467 = vdwg.mxu0
    %468 = vmatprep.subr.mxu0 %v348
    %469 = vmatpush1.msra.mxu0 %v347
    %470 = vmatprep.subr.mxu0 %v363
    %471 = vmatpush1.msra.mxu0 %v362
    %472 = vmatprep.subr.mxu0 %v373
    %473 = vmatpush1.msra.mxu0 %v372
    %474 = vmatprep.subr.mxu0 %v381
    %475 = vmatpush1.msra.mxu0 %v380
    %476 = vmatprep.subr.mxu0 0.0
    %477 = vmatpush1.msra.mxu0 0.0
    %478 = vmatprep.subr.mxu0 0.0
    %479 = vmatpush1.msra.mxu0 0.0
    %480 = vmatprep.subr.mxu0 0.0
    %481 = vmatpush1.msra.mxu0 0.0
    %482 = vmatprep.subr.mxu0 0.0
    %483 = vmatpush1.msra.mxu0 0.0
    %484 = vmatprep.subr.mxu0 0.0
    %485 = vmatpush1.msra.mxu0 0.0
    %486 = vmatprep.subr.mxu0 0.0
    %487 = vmatpush1.msra.mxu0 0.0
    %488 = vmatprep.subr.mxu0 0.0
    %489 = vmatpush1.msra.mxu0 0.0
    %490 = vmatprep.subr.mxu0 0.0
    %491 = vmatpush1.msra.mxu0 0.0
    %492 = vmatprep.subr.mxu0 0.0
    %493 = vmatpush1.msra.mxu0 0.0
    %494 = vmatprep.subr.mxu0 0.0
    %495 = vmatpush1.msra.mxu0 0.0
    %496 = vmatprep.subr.mxu0 0.0
    %497 = vmatpush1.msra.mxu0 0.0
    %498 = vmatprep.subr.mxu0 0.0
    %499 = vmatpush1.msra.mxu0 0.0
    %500 = vmatprep.subr.mxu0 0.0
    %501 = vmatpush1.msra.mxu0 0.0
    %502 = vmatprep.subr.mxu0 0.0
    %503 = vmatpush1.msra.mxu0 0.0
    %504 = vmatprep.subr.mxu0 0.0
    %505 = vmatpush1.msra.mxu0 0.0
    %506 = vmatprep.subr.mxu0 0.0
    %507 = vmatpush1.msra.mxu0 0.0
    %508 = vmatprep.subr.mxu0 0.0
    %509 = vmatpush1.msra.mxu0 0.0
    %510 = vmatprep.subr.mxu0 0.0
    %511 = vmatpush1.msra.mxu0 0.0
    %512 = vmatprep.subr.mxu0 0.0
    %513 = vmatpush1.msra.mxu0 0.0
    %514 = vmatprep.subr.mxu0 0.0
    %515 = vmatpush1.msra.mxu0 0.0
    %516 = vmatprep.subr.mxu0 0.0
    %517 = vmatpush1.msra.mxu0 0.0
    %518 = vmatprep.subr.mxu0 0.0
    %519 = vmatpush1.msra.mxu0 0.0
    %520 = vmatprep.subr.mxu0 0.0
    %521 = vmatpush1.msra.mxu0 0.0
    %522 = vmatprep.subr.mxu0 0.0
    %523 = vmatpush1.msra.mxu0 0.0
    %524 = vmatprep.subr.mxu0 0.0
    %525 = vmatpush1.msra.mxu0 0.0
    %526 = vmatprep.subr.mxu0 0.0
    %527 = vmatpush1.msra.mxu0 0.0
    %528 = vmatprep.subr.mxu0 0.0
    %529 = vmatpush1.msra.mxu0 0.0
    %530 = vmatprep.subr.mxu0 0.0
    %531 = vmatpush1.msra.mxu0 0.0
    %532 = vmatprep.mubr.f32.mxu0 0.0
    %533 = vmatmul.mubr.f32.gmra.mrb[0].mxu0 %v386
    %v534 = vpop.f32.mrb[0].mxu0
    %v535 = vadd.f32 0.0, %v534
    %v536 = vpop.f32.mrb[0].mxu0
    %v537 = vadd.f32 0.0, %v536
    %538 = vmatprep.mubr.f32.mxu0 0.0
    %539 = vmatmul.mubr.f32.gmra.mrb[0].mxu0 %v389
    %v540 = vpop.f32.mrb[0].mxu0
    %v541 = vadd.f32 0.0, %v540
    %v542 = vpop.f32.mrb[0].mxu0
    %v543 = vadd.f32 0.0, %v542
    %544 = vdwg.mxu0
    %v545 = vsub.f32 0.0, %v458
    %v546 = vsub.f32 0.0, %v460
    %v547 = vsub.f32 0.0, %v535
    %v548 = vsub.f32 0.0, %v537
    %v549 = vsub.f32 0.0, %v464
    %v550 = vsub.f32 0.0, %v466
    %v551 = vsub.f32 0.0, %v541
    %v552 = vsub.f32 0.0, %v543
    %v553 = vmul.f32 %v545, 1.442695
    %v554 = vpow.pop %v553
    %v555 = vmul.f32 %v546, 1.442695
    %v556 = vpow.pop %v555
    %v557 = vmul.f32 %v547, 1.442695
    %v558 = vpow.pop %v557
    %v559 = vmul.f32 %v548, 1.442695
    %v560 = vpow.pop %v559
    %v561 = vmul.f32 %v549, 1.442695
    %v562 = vpow.pop %v561
    %v563 = vmul.f32 %v550, 1.442695
    %v564 = vpow.pop %v563
    %v565 = vmul.f32 %v551, 1.442695
    %v566 = vpow.pop %v565
    %v567 = vmul.f32 %v552, 1.442695
    %v568 = vpow.pop %v567
    %v569 = vadd.f32 %v554, 1.0
    %v570 = vadd.f32 %v556, 1.0
    %v571 = vadd.f32 %v558, 1.0
    %v572 = vadd.f32 %v560, 1.0
    %v573 = vadd.f32 %v562, 1.0
    %v574 = vadd.f32 %v564, 1.0
    %v575 = vadd.f32 %v566, 1.0
    %v576 = vadd.f32 %v568, 1.0
    %v577 = vrcp.pop %v569
    %v578 = vrcp.pop %v570
    %v579 = vrcp.pop %v571
    %v580 = vrcp.pop %v572
    %v581 = vrcp.pop %v573
    %v582 = vrcp.pop %v574
    %v583 = vrcp.pop %v575
    %v584 = vrcp.pop %v576
    %v585 = vmul.f32 %v458, %v577
    %v586 = vmul.f32 %v460, %v578
    %v587 = vmul.f32 %v535, %v579
    %v588 = vmul.f32 %v537, %v580
    %v589 = vmul.f32 %v464, %v581
    %v590 = vmul.f32 %v466, %v582
    %v591 = vmul.f32 %v541, %v583
    %v592 = vmul.f32 %v543, %v584
    %593 = vst [vmem:[#allocation5] sm:$0xff] %v585
    %594 = vst [vmem:[#allocation5 + $0x8] sm:$0xff] %v586
    %595 = vst [vmem:[#allocation5 + $0x10] sm:$0xff] %v589
    %596 = vst [vmem:[#allocation5 + $0x18] sm:$0xff] %v590
    %s597 = scalar_lea.vmem [#allocation5], 32
    %598 = vst [vmem:[%s597] sm:$0xff] %v587
    %599 = vst [vmem:[%s597 + $0x8] sm:$0xff] %v588
    %600 = vst [vmem:[%s597 + $0x10] sm:$0xff] %v591
    %601 = vst [vmem:[%s597 + $0x18] sm:$0xff] %v592
    // Predicated region
    $region18: #{tpu_custom_call.1} parent=1 // pred_check
      _
    $region19: #{tpu_custom_call.1} parent=1 // pred_check_branch
      %603 = sbr.rel (0) target = $region21
    $region20: #{tpu_custom_call.1} parent=1 // pred_region
      %s605 = ssub.s32 1024, 1024
      %606 = vsyncadd [#allocation4], %s605
      %s607 = sshll.u32 [#allocation5], 4
      %s608 = int_to_ptr.vmem [resolvable:$true] %s607
      %613 = dma.vmem_to_hbm [thread:$0]  %s608, 1024, %s3, [#allocation4], 256, 256, 16
    $region21: #{tpu_custom_call.1} parent=1 // pred_fallthru
      _
    // Predicated region
    $region22: #{tpu_custom_call.1} parent=1 // pred_check
      _
    $region23: #{tpu_custom_call.1} parent=1 // pred_check_branch
      %615 = sbr.rel (0) target = $region25
    $region24: #{tpu_custom_call.1} parent=1 // pred_region
      %616 = dma.done [#allocation4], 1024
    $region25: #{tpu_custom_call.1} parent=1 // pred_fallthru
      _
    %617 = vsyncpa [#allocation3], 1
    %618 = vsyncpa [#allocation4], 1

</llo_original>
